<compile_context>
chip_gen: v7x
topology: tpu7x:2x2x1
jax: 0.10.0
libtpu: 0.0.40
codegen_flags: <defaults>
</compile_context>

<pallas_src>
import jax
import jax.numpy as jnp
from jax.experimental import pallas as pl
from jax.experimental.pallas import tpu as pltpu

HID = (200, 100, 80)  # FullyConnectedLayer hidden widths (fixed by the module)


def _round_up(n, m):
    return ((n + m - 1) // m) * m


# ----------------------------- Pallas kernel ---------------------------------
def _fcl_kernel(x_ref, w1, b1, w2, b2, w3, b3, w4, b4, o_ref):
    """One batch tile through the whole 4-layer MLP (weights resident in VMEM)."""
    x = x_ref[...]                                                   # (bb, in)
    h = jnp.dot(x, w1[...], preferred_element_type=jnp.float32) + b1[...]   # fc1 (no act)
    h = jnp.tanh(jnp.dot(h, w2[...], preferred_element_type=jnp.float32) + b2[...])  # tanh(fc2)
    h = jnp.tanh(jnp.dot(h, w3[...], preferred_element_type=jnp.float32) + b3[...])  # tanh(fc3)
    o_ref[...] = (jnp.dot(h, w4[...], preferred_element_type=jnp.float32)
                  + b4[...]).astype(o_ref.dtype)                     # fc4 (no act)


# ------------------------------- wrapper --------------------------------------
def fully_connected_forward(x, params, *, block_b=128):
    """x: (B, in_features) f32; params: [W1,b1,W2,b2,W3,b3,W4,b4] with W:(in,out), b:(1,out)."""
    B, in_dim = x.shape
    out_dim = params[-1].shape[-1]

    # batch tile: 128 rows/step (or the whole padded batch if smaller)
    bb = min(block_b, _round_up(B, 8))
    Bp = _round_up(B, bb)
    if Bp != B:
        x = jnp.pad(x, ((0, Bp - B), (0, 0)))

    def batch_spec(ncols):
        # second-last dim multiple of 8, last dim = full array dim -> valid tile
        return pl.BlockSpec((bb, ncols), lambda i: (i, 0))

    def resident_spec(shape):
        # constant index_map: weight/bias block is identical for every grid step,
        # so it stays resident in VMEM (no re-DMA per step).
        return pl.BlockSpec(shape, lambda i: (0, 0))

    in_specs = [batch_spec(in_dim)] + [resident_spec(p.shape) for p in params]

    out = pl.pallas_call(
        _fcl_kernel,
        out_shape=jax.ShapeDtypeStruct((Bp, out_dim), jnp.float32),
        grid_spec=pltpu.PrefetchScalarGridSpec(
            num_scalar_prefetch=0,
            grid=(Bp // bb,),
            in_specs=in_specs,
            out_specs=batch_spec(out_dim),
        ),
        compiler_params=pltpu.CompilerParams(
            dimension_semantics=("parallel",),   # v7x: shard row blocks over 2 TCs
        ),
    )(x, *params)
    return out[:B]


# --------------------------- parameter init ------------------------------------
def init_params(key, input_size, output_size):
    """PyTorch nn.Linear-style init, stored transposed as (in, out)."""
    dims = [input_size, HID[0], HID[1], HID[2], output_size]
    keys = jax.random.split(key, len(dims) - 1)
    params = []
    for k, (fi, fo) in zip(keys, zip(dims[:-1], dims[1:])):
        kw, kb = jax.random.split(k)
        bound = 1.0 / (float(fi) ** 0.5)
        W = jax.random.uniform(kw, (fi, fo), jnp.float32, -bound, bound)
        b = jax.random.uniform(kb, (1, fo), jnp.float32, -bound, bound)
        params += [W, b]
    return params


# ---------------------------- pure-JAX reference --------------------------------
def _ref_forward(x, params):
    w1, b1, w2, b2, w3, b3, w4, b4 = params
    h = x @ w1 + b1
    h = jnp.tanh(h @ w2 + b2)
    h = jnp.tanh(h @ w3 + b3)
    return h @ w4 + b4


# ---------------------------------- main ----------------------------------------
if __name__ == "__main__":
    IN_FEATURES = 16
    OUT_FEATURES = 16
    BATCH = 256   # 2 grid steps of 128 rows each

    root = jax.random.PRNGKey(0)
    k_params, k_x = jax.random.split(root)

    params = init_params(k_params, IN_FEATURES, OUT_FEATURES)
    x = jax.random.normal(k_x, (BATCH, IN_FEATURES), jnp.float32)

    out = fully_connected_forward(x, params)
    out = jax.block_until_ready(out)

    ref = _ref_forward(x, params)
    assert out.shape == (BATCH, OUT_FEATURES)
    assert jnp.allclose(out, ref, rtol=2e-3, atol=2e-3), "mismatch vs reference"

    print("KERNEL_OK")
</pallas_src>

<mosaic_0001>
module attributes {stable_mosaic.version = 11 : i64} {
  func.func @_fcl_kernel(%arg0: i32, %arg1: memref<128x16xf32, #tpu.memory_space<vmem>>, %arg2: memref<16x200xf32, #tpu.memory_space<vmem>>, %arg3: memref<1x200xf32, #tpu.memory_space<vmem>>, %arg4: memref<200x100xf32, #tpu.memory_space<vmem>>, %arg5: memref<1x100xf32, #tpu.memory_space<vmem>>, %arg6: memref<100x80xf32, #tpu.memory_space<vmem>>, %arg7: memref<1x80xf32, #tpu.memory_space<vmem>>, %arg8: memref<80x16xf32, #tpu.memory_space<vmem>>, %arg9: memref<1x16xf32, #tpu.memory_space<vmem>>, %arg10: memref<128x16xf32, #tpu.memory_space<vmem>>) attributes {dimension_semantics = [#tpu.dimension_semantics<parallel>], iteration_bounds = array<i64: 2>, scalar_prefetch = 0 : i64, scratch_operands = 0 : i64, tpu.core_type = #tpu.core_type<tc>, window_params = [{transform_indices = @transform_0, window_bounds = array<i64: 128, 16>}, {pipeline_mode = #tpu.pipeline_mode<synchronous>, transform_indices = @transform_1, window_bounds = array<i64: 16, 200>}, {pipeline_mode = #tpu.pipeline_mode<synchronous>, transform_indices = @transform_2, window_bounds = array<i64: 1, 200>}, {pipeline_mode = #tpu.pipeline_mode<synchronous>, transform_indices = @transform_3, window_bounds = array<i64: 200, 100>}, {pipeline_mode = #tpu.pipeline_mode<synchronous>, transform_indices = @transform_4, window_bounds = array<i64: 1, 100>}, {pipeline_mode = #tpu.pipeline_mode<synchronous>, transform_indices = @transform_5, window_bounds = array<i64: 100, 80>}, {pipeline_mode = #tpu.pipeline_mode<synchronous>, transform_indices = @transform_6, window_bounds = array<i64: 1, 80>}, {pipeline_mode = #tpu.pipeline_mode<synchronous>, transform_indices = @transform_7, window_bounds = array<i64: 80, 16>}, {pipeline_mode = #tpu.pipeline_mode<synchronous>, transform_indices = @transform_8, window_bounds = array<i64: 1, 16>}, {transform_indices = @transform_9, window_bounds = array<i64: 128, 16>}]} {
    %c0 = arith.constant 0 : index
    %c0_0 = arith.constant 0 : index
    %0 = vector.load %arg1[%c0, %c0_0] : memref<128x16xf32, #tpu.memory_space<vmem>>, vector<128x16xf32>
    %c0_1 = arith.constant 0 : index
    %c0_2 = arith.constant 0 : index
    %1 = vector.load %arg2[%c0_1, %c0_2] : memref<16x200xf32, #tpu.memory_space<vmem>>, vector<16x200xf32>
    %cst = arith.constant dense<0.000000e+00> : vector<128x200xf32>
    %2 = tpu.matmul %0, %1, %cst {dimension_numbers = #tpu.dot_dimension_numbers<[1], [0], [0], [1], [0, 0, 1, 1], [], []>} : vector<128x16xf32>, vector<16x200xf32>, vector<128x200xf32> -> vector<128x200xf32>
    %c0_3 = arith.constant 0 : index
    %c0_4 = arith.constant 0 : index
    %3 = vector.load %arg3[%c0_3, %c0_4] : memref<1x200xf32, #tpu.memory_space<vmem>>, vector<1x200xf32>
    %4 = vector.broadcast %3 : vector<1x200xf32> to vector<128x200xf32>
    %5 = arith.addf %2, %4 : vector<128x200xf32>
    %c0_5 = arith.constant 0 : index
    %c0_6 = arith.constant 0 : index
    %6 = vector.load %arg4[%c0_5, %c0_6] : memref<200x100xf32, #tpu.memory_space<vmem>>, vector<200x100xf32>
    %cst_7 = arith.constant dense<0.000000e+00> : vector<128x100xf32>
    %7 = tpu.matmul %5, %6, %cst_7 {dimension_numbers = #tpu.dot_dimension_numbers<[1], [0], [0], [1], [0, 0, 1, 1], [], []>} : vector<128x200xf32>, vector<200x100xf32>, vector<128x100xf32> -> vector<128x100xf32>
    %c0_8 = arith.constant 0 : index
    %c0_9 = arith.constant 0 : index
    %8 = vector.load %arg5[%c0_8, %c0_9] : memref<1x100xf32, #tpu.memory_space<vmem>>, vector<1x100xf32>
    %9 = vector.broadcast %8 : vector<1x100xf32> to vector<128x100xf32>
    %10 = arith.addf %7, %9 : vector<128x100xf32>
    %11 = math.tanh %10 : vector<128x100xf32>
    %c0_10 = arith.constant 0 : index
    %c0_11 = arith.constant 0 : index
    %12 = vector.load %arg6[%c0_10, %c0_11] : memref<100x80xf32, #tpu.memory_space<vmem>>, vector<100x80xf32>
    %cst_12 = arith.constant dense<0.000000e+00> : vector<128x80xf32>
    %13 = tpu.matmul %11, %12, %cst_12 {dimension_numbers = #tpu.dot_dimension_numbers<[1], [0], [0], [1], [0, 0, 1, 1], [], []>} : vector<128x100xf32>, vector<100x80xf32>, vector<128x80xf32> -> vector<128x80xf32>
    %c0_13 = arith.constant 0 : index
    %c0_14 = arith.constant 0 : index
    %14 = vector.load %arg7[%c0_13, %c0_14] : memref<1x80xf32, #tpu.memory_space<vmem>>, vector<1x80xf32>
    %15 = vector.broadcast %14 : vector<1x80xf32> to vector<128x80xf32>
    %16 = arith.addf %13, %15 : vector<128x80xf32>
    %17 = math.tanh %16 : vector<128x80xf32>
    %c0_15 = arith.constant 0 : index
    %c0_16 = arith.constant 0 : index
    %18 = vector.load %arg8[%c0_15, %c0_16] : memref<80x16xf32, #tpu.memory_space<vmem>>, vector<80x16xf32>
    %cst_17 = arith.constant dense<0.000000e+00> : vector<128x16xf32>
    %19 = tpu.matmul %17, %18, %cst_17 {dimension_numbers = #tpu.dot_dimension_numbers<[1], [0], [0], [1], [0, 0, 1, 1], [], []>} : vector<128x80xf32>, vector<80x16xf32>, vector<128x16xf32> -> vector<128x16xf32>
    %c0_18 = arith.constant 0 : index
    %c0_19 = arith.constant 0 : index
    %20 = vector.load %arg9[%c0_18, %c0_19] : memref<1x16xf32, #tpu.memory_space<vmem>>, vector<1x16xf32>
    %21 = vector.broadcast %20 : vector<1x16xf32> to vector<128x16xf32>
    %22 = arith.addf %19, %21 : vector<128x16xf32>
    %c0_20 = arith.constant 0 : index
    %c0_21 = arith.constant 0 : index
    %23 = vector.load %arg10[%c0_20, %c0_21] : memref<128x16xf32, #tpu.memory_space<vmem>>, vector<128x16xf32>
    tpu.vector_store %arg10[%c0_20, %c0_21], %22 {strides = array<i32>} : memref<128x16xf32, #tpu.memory_space<vmem>>, vector<128x16xf32>,
    return
  }
  func.func @transform_0(%arg0: i32) -> (i32, i32) {
    %c0_i32 = arith.constant 0 : i32
    %c0_i32_0 = arith.constant 0 : i32
    return %arg0, %c0_i32 : i32, i32
  }
  func.func @transform_1(%arg0: i32) -> (i32, i32) {
    %c0_i32 = arith.constant 0 : i32
    %c0_i32_0 = arith.constant 0 : i32
    %c0_i32_1 = arith.constant 0 : i32
    return %c0_i32, %c0_i32_0 : i32, i32
  }
  func.func @transform_2(%arg0: i32) -> (i32, i32) {
    %c0_i32 = arith.constant 0 : i32
    %c0_i32_0 = arith.constant 0 : i32
    %c0_i32_1 = arith.constant 0 : i32
    return %c0_i32, %c0_i32_0 : i32, i32
  }
  func.func @transform_3(%arg0: i32) -> (i32, i32) {
    %c0_i32 = arith.constant 0 : i32
    %c0_i32_0 = arith.constant 0 : i32
    %c0_i32_1 = arith.constant 0 : i32
    return %c0_i32, %c0_i32_0 : i32, i32
  }
  func.func @transform_4(%arg0: i32) -> (i32, i32) {
    %c0_i32 = arith.constant 0 : i32
    %c0_i32_0 = arith.constant 0 : i32
    %c0_i32_1 = arith.constant 0 : i32
    return %c0_i32, %c0_i32_0 : i32, i32
  }
  func.func @transform_5(%arg0: i32) -> (i32, i32) {
    %c0_i32 = arith.constant 0 : i32
    %c0_i32_0 = arith.constant 0 : i32
    %c0_i32_1 = arith.constant 0 : i32
    return %c0_i32, %c0_i32_0 : i32, i32
  }
  func.func @transform_6(%arg0: i32) -> (i32, i32) {
    %c0_i32 = arith.constant 0 : i32
    %c0_i32_0 = arith.constant 0 : i32
    %c0_i32_1 = arith.constant 0 : i32
    return %c0_i32, %c0_i32_0 : i32, i32
  }
  func.func @transform_7(%arg0: i32) -> (i32, i32) {
    %c0_i32 = arith.constant 0 : i32
    %c0_i32_0 = arith.constant 0 : i32
    %c0_i32_1 = arith.constant 0 : i32
    return %c0_i32, %c0_i32_0 : i32, i32
  }
  func.func @transform_8(%arg0: i32) -> (i32, i32) {
    %c0_i32 = arith.constant 0 : i32
    %c0_i32_0 = arith.constant 0 : i32
    %c0_i32_1 = arith.constant 0 : i32
    return %c0_i32, %c0_i32_0 : i32, i32
  }
  func.func @transform_9(%arg0: i32) -> (i32, i32) {
    %c0_i32 = arith.constant 0 : i32
    %c0_i32_0 = arith.constant 0 : i32
    return %arg0, %c0_i32 : i32, i32
  }
}

</mosaic_0001>

<llo_original>
// kernel: tpu_custom_call.1
$region0: #{tpu_custom_call.1}
  #allocation0 [shape = 'u32[]', space=smem, size = 0x4, offset = 0x4, fixed_abs, tag = 'smem constant byte address 0x4 - core index']
  #allocation1 [shape = 'u32[144,128]{1,0:T(1,128)}', space=vmem, size = 0x12000, scoped, tag = 'internal scratch']
  %s0 = inlined_call_operand.vmem [shape: f32[256,16], index: 0, kind: input, shape index: {}]
  %s1 = inlined_call_operand.vmem [shape: f32[16,200], index: 1, kind: input, shape index: {}]
  %s2 = inlined_call_operand.vmem [shape: f32[1,200], index: 2, kind: input, shape index: {}]
  %s3 = inlined_call_operand.vmem [shape: f32[200,100], index: 3, kind: input, shape index: {}]
  %s4 = inlined_call_operand.vmem [shape: f32[1,100], index: 4, kind: input, shape index: {}]
  %s5 = inlined_call_operand.vmem [shape: f32[100,80], index: 5, kind: input, shape index: {}]
  %s6 = inlined_call_operand.vmem [shape: f32[1,80], index: 6, kind: input, shape index: {}]
  %s7 = inlined_call_operand.vmem [shape: f32[80,16], index: 7, kind: input, shape index: {}]
  %s8 = inlined_call_operand.vmem [shape: f32[1,16], index: 8, kind: input, shape index: {}]
  %s9 = inlined_call_operand.vmem [shape: f32[256,16], index: 9, kind: output, shape index: {}]
  %s10 = sld [smem:[#allocation0]]
  $region69: #{tpu_custom_call.1} parent=0
    _
  %s12 = ssub.s32 1, %s10
  %s13 = scalar_select 0, %s12, %s10
  loop: start=0, step=1, limit=4
  $region2: #{tpu_custom_call.1} parent=0 // loop_pre_header
    _
  $region3: #{tpu_custom_call.1} parent=0 // loop_header
    %s15 = sphi 0, %s19
    %p16 = scmp.ge.s32.totalorder %s15, 4
    %s25 = sphi 0, %s27
    %s28 = sphi 0, %s25
    %s29 = sphi 0, %s28
    %s45 = sphi 0, %s29
    %s49 = sphi 0, %s49
    %s51 = sphi 0, %s49
    %s52 = sphi 0, %s51
    %s66 = sphi 0, %s52
    %s70 = sphi 0, %s70
    %s72 = sphi 0, %s70
    %s73 = sphi 0, %s72
    %s87 = sphi 0, %s73
    %s91 = sphi 0, %s91
    %s93 = sphi 0, %s91
    %s94 = sphi 0, %s93
    %s108 = sphi 0, %s94
    %s112 = sphi 0, %s112
    %s114 = sphi 0, %s112
    %s115 = sphi 0, %s114
    %s129 = sphi 0, %s115
    %s133 = sphi 0, %s133
    %s135 = sphi 0, %s133
    %s136 = sphi 0, %s135
    %s150 = sphi 0, %s136
    %s154 = sphi 0, %s154
    %s156 = sphi 0, %s154
    %s157 = sphi 0, %s156
    %s171 = sphi 0, %s157
    %s175 = sphi 0, %s175
    %s177 = sphi 0, %s175
    %s178 = sphi 0, %s177
    %s192 = sphi 0, %s178
    %s196 = sphi 0, %s196
    %s198 = sphi 0, %s196
    %s199 = sphi 0, %s198
    %s213 = sphi 0, %s199
    %s219 = sphi 0, %s221
    %s222 = sphi 0, %s219
    %s223 = sphi 0, %s222
    %s239 = sphi 0, %s223
  $region4: #{tpu_custom_call.1} parent=0 // loop_header_branch
    %18 = sbr.rel (%p16) target = $region8
  $region5: #{tpu_custom_call.1} parent=0 // loop_body
    %s20 = ssub.s32 %s15, 1
    %s21 = ssub.s32 %s15, 2
    %s22 = sadd.s32 %s15, 1
    %s23 = ssub.s32 %s15, %s22
    %p24 = scmp.eq.s32.totalorder %s23, 0
    %s26 = sadd.s32 %s25, 1
    %s27 = scalar_select %p24, %s25, %s26
    %p30 = pneg %p24
    %p31 = scmp.eq.s32.totalorder %s15, 1
    %p32 = por %p30, %p31
    %p33 = scmp.ne.s32.totalorder %s25, %s28
    %p34 = scmp.eq.s32.totalorder %s15, 0
    %p35 = por %p33, %p34
    %p36 = scmp.ne.s32.totalorder %s25, %s28
    %p37 = scmp.eq.s32.totalorder %s20, 1
    %p38 = por %p36, %p37
    %p39 = scmp.ne.s32.totalorder %s28, %s29
    %p40 = scmp.eq.s32.totalorder %s20, 0
    %p41 = por %p39, %p40
    %p42 = scmp.ne.s32.totalorder %s28, %s29
    %p43 = scmp.eq.s32.totalorder %s21, 1
    %p44 = por %p42, %p43
    %p46 = scmp.ne.s32.totalorder %s29, %s45
    %p47 = scmp.eq.s32.totalorder %s21, 0
    %p48 = por %p46, %p47
    %s50 = sadd.s32 %s49, 1
    %p53 = scmp.eq.s32.totalorder %s15, 1
    %p54 = scmp.ne.s32.totalorder %s49, %s51
    %p55 = scmp.eq.s32.totalorder %s15, 0
    %p56 = por %p54, %p55
    %p57 = scmp.ne.s32.totalorder %s49, %s51
    %p58 = scmp.eq.s32.totalorder %s20, 1
    %p59 = por %p57, %p58
    %p60 = scmp.ne.s32.totalorder %s51, %s52
    %p61 = scmp.eq.s32.totalorder %s20, 0
    %p62 = por %p60, %p61
    %p63 = scmp.ne.s32.totalorder %s51, %s52
    %p64 = scmp.eq.s32.totalorder %s21, 1
    %p65 = por %p63, %p64
    %p67 = scmp.ne.s32.totalorder %s52, %s66
    %p68 = scmp.eq.s32.totalorder %s21, 0
    %p69 = por %p67, %p68
    %s71 = sadd.s32 %s70, 1
    %p74 = scmp.eq.s32.totalorder %s15, 1
    %p75 = scmp.ne.s32.totalorder %s70, %s72
    %p76 = scmp.eq.s32.totalorder %s15, 0
    %p77 = por %p75, %p76
    %p78 = scmp.ne.s32.totalorder %s70, %s72
    %p79 = scmp.eq.s32.totalorder %s20, 1
    %p80 = por %p78, %p79
    %p81 = scmp.ne.s32.totalorder %s72, %s73
    %p82 = scmp.eq.s32.totalorder %s20, 0
    %p83 = por %p81, %p82
    %p84 = scmp.ne.s32.totalorder %s72, %s73
    %p85 = scmp.eq.s32.totalorder %s21, 1
    %p86 = por %p84, %p85
    %p88 = scmp.ne.s32.totalorder %s73, %s87
    %p89 = scmp.eq.s32.totalorder %s21, 0
    %p90 = por %p88, %p89
    %s92 = sadd.s32 %s91, 1
    %p95 = scmp.eq.s32.totalorder %s15, 1
    %p96 = scmp.ne.s32.totalorder %s91, %s93
    %p97 = scmp.eq.s32.totalorder %s15, 0
    %p98 = por %p96, %p97
    %p99 = scmp.ne.s32.totalorder %s91, %s93
    %p100 = scmp.eq.s32.totalorder %s20, 1
    %p101 = por %p99, %p100
    %p102 = scmp.ne.s32.totalorder %s93, %s94
    %p103 = scmp.eq.s32.totalorder %s20, 0
    %p104 = por %p102, %p103
    %p105 = scmp.ne.s32.totalorder %s93, %s94
    %p106 = scmp.eq.s32.totalorder %s21, 1
    %p107 = por %p105, %p106
    %p109 = scmp.ne.s32.totalorder %s94, %s108
    %p110 = scmp.eq.s32.totalorder %s21, 0
    %p111 = por %p109, %p110
    %s113 = sadd.s32 %s112, 1
    %p116 = scmp.eq.s32.totalorder %s15, 1
    %p117 = scmp.ne.s32.totalorder %s112, %s114
    %p118 = scmp.eq.s32.totalorder %s15, 0
    %p119 = por %p117, %p118
    %p120 = scmp.ne.s32.totalorder %s112, %s114
    %p121 = scmp.eq.s32.totalorder %s20, 1
    %p122 = por %p120, %p121
    %p123 = scmp.ne.s32.totalorder %s114, %s115
    %p124 = scmp.eq.s32.totalorder %s20, 0
    %p125 = por %p123, %p124
    %p126 = scmp.ne.s32.totalorder %s114, %s115
    %p127 = scmp.eq.s32.totalorder %s21, 1
    %p128 = por %p126, %p127
    %p130 = scmp.ne.s32.totalorder %s115, %s129
    %p131 = scmp.eq.s32.totalorder %s21, 0
    %p132 = por %p130, %p131
    %s134 = sadd.s32 %s133, 1
    %p137 = scmp.eq.s32.totalorder %s15, 1
    %p138 = scmp.ne.s32.totalorder %s133, %s135
    %p139 = scmp.eq.s32.totalorder %s15, 0
    %p140 = por %p138, %p139
    %p141 = scmp.ne.s32.totalorder %s133, %s135
    %p142 = scmp.eq.s32.totalorder %s20, 1
    %p143 = por %p141, %p142
    %p144 = scmp.ne.s32.totalorder %s135, %s136
    %p145 = scmp.eq.s32.totalorder %s20, 0
    %p146 = por %p144, %p145
    %p147 = scmp.ne.s32.totalorder %s135, %s136
    %p148 = scmp.eq.s32.totalorder %s21, 1
    %p149 = por %p147, %p148
    %p151 = scmp.ne.s32.totalorder %s136, %s150
    %p152 = scmp.eq.s32.totalorder %s21, 0
    %p153 = por %p151, %p152
    %s155 = sadd.s32 %s154, 1
    %p158 = scmp.eq.s32.totalorder %s15, 1
    %p159 = scmp.ne.s32.totalorder %s154, %s156
    %p160 = scmp.eq.s32.totalorder %s15, 0
    %p161 = por %p159, %p160
    %p162 = scmp.ne.s32.totalorder %s154, %s156
    %p163 = scmp.eq.s32.totalorder %s20, 1
    %p164 = por %p162, %p163
    %p165 = scmp.ne.s32.totalorder %s156, %s157
    %p166 = scmp.eq.s32.totalorder %s20, 0
    %p167 = por %p165, %p166
    %p168 = scmp.ne.s32.totalorder %s156, %s157
    %p169 = scmp.eq.s32.totalorder %s21, 1
    %p170 = por %p168, %p169
    %p172 = scmp.ne.s32.totalorder %s157, %s171
    %p173 = scmp.eq.s32.totalorder %s21, 0
    %p174 = por %p172, %p173
    %s176 = sadd.s32 %s175, 1
    %p179 = scmp.eq.s32.totalorder %s15, 1
    %p180 = scmp.ne.s32.totalorder %s175, %s177
    %p181 = scmp.eq.s32.totalorder %s15, 0
    %p182 = por %p180, %p181
    %p183 = scmp.ne.s32.totalorder %s175, %s177
    %p184 = scmp.eq.s32.totalorder %s20, 1
    %p185 = por %p183, %p184
    %p186 = scmp.ne.s32.totalorder %s177, %s178
    %p187 = scmp.eq.s32.totalorder %s20, 0
    %p188 = por %p186, %p187
    %p189 = scmp.ne.s32.totalorder %s177, %s178
    %p190 = scmp.eq.s32.totalorder %s21, 1
    %p191 = por %p189, %p190
    %p193 = scmp.ne.s32.totalorder %s178, %s192
    %p194 = scmp.eq.s32.totalorder %s21, 0
    %p195 = por %p193, %p194
    %s197 = sadd.s32 %s196, 1
    %p200 = scmp.eq.s32.totalorder %s15, 1
    %p201 = scmp.ne.s32.totalorder %s196, %s198
    %p202 = scmp.eq.s32.totalorder %s15, 0
    %p203 = por %p201, %p202
    %p204 = scmp.ne.s32.totalorder %s196, %s198
    %p205 = scmp.eq.s32.totalorder %s20, 1
    %p206 = por %p204, %p205
    %p207 = scmp.ne.s32.totalorder %s198, %s199
    %p208 = scmp.eq.s32.totalorder %s20, 0
    %p209 = por %p207, %p208
    %p210 = scmp.ne.s32.totalorder %s198, %s199
    %p211 = scmp.eq.s32.totalorder %s21, 1
    %p212 = por %p210, %p211
    %p214 = scmp.ne.s32.totalorder %s199, %s213
    %p215 = scmp.eq.s32.totalorder %s21, 0
    %p216 = por %p214, %p215
    %s217 = ssub.s32 %s15, %s22
    %p218 = scmp.eq.s32.totalorder %s217, 0
    %s220 = sadd.s32 %s219, 1
    %s221 = scalar_select %p218, %s219, %s220
    %p224 = pneg %p218
    %p225 = scmp.eq.s32.totalorder %s15, 1
    %p226 = por %p224, %p225
    %p227 = scmp.ne.s32.totalorder %s219, %s222
    %p228 = scmp.eq.s32.totalorder %s15, 0
    %p229 = por %p227, %p228
    %p230 = scmp.ne.s32.totalorder %s219, %s222
    %p231 = scmp.eq.s32.totalorder %s20, 1
    %p232 = por %p230, %p231
    %p233 = scmp.ne.s32.totalorder %s222, %s223
    %p234 = scmp.eq.s32.totalorder %s20, 0
    %p235 = por %p233, %p234
    %p236 = scmp.ne.s32.totalorder %s222, %s223
    %p237 = scmp.eq.s32.totalorder %s21, 1
    %p238 = por %p236, %p237
    %p240 = scmp.ne.s32.totalorder %s223, %s239
    %p241 = scmp.eq.s32.totalorder %s21, 0
    %p242 = por %p240, %p241
    %p243 = scmp.le.s32.totalorder 1, %s15
    %p244 = scmp.lt.s32.totalorder %s15, 3
    %p245 = pnand %p243, %p244
    %p246 = pneg %p245
    // Predicated region
    $region9: #{tpu_custom_call.1} parent=5 // pred_check
      _
    $region10: #{tpu_custom_call.1} parent=5 // pred_check_branch
      %248 = sbr.rel (%p245) target = $region12
    $region11: #{tpu_custom_call.1} parent=5 // pred_region
      %s249 = ssub.s32 %s15, 1
      // Predicated region
      $region13: #{tpu_custom_call.1} parent=11 // pred_check
        %p250 = pneg %p62
      $region14: #{tpu_custom_call.1} parent=11 // pred_check_branch
        %252 = sbr.rel (%p250) target = $region16
      $region15: #{tpu_custom_call.1} parent=11 // pred_region
        _
      $region16: #{tpu_custom_call.1} parent=11 // pred_fallthru
        _
      // Predicated region
      $region17: #{tpu_custom_call.1} parent=11 // pred_check
        %p253 = pneg %p83
      $region18: #{tpu_custom_call.1} parent=11 // pred_check_branch
        %255 = sbr.rel (%p253) target = $region20
      $region19: #{tpu_custom_call.1} parent=11 // pred_region
        _
      $region20: #{tpu_custom_call.1} parent=11 // pred_fallthru
        _
      // Predicated region
      $region21: #{tpu_custom_call.1} parent=11 // pred_check
        %p256 = pneg %p104
      $region22: #{tpu_custom_call.1} parent=11 // pred_check_branch
        %258 = sbr.rel (%p256) target = $region24
      $region23: #{tpu_custom_call.1} parent=11 // pred_region
        _
      $region24: #{tpu_custom_call.1} parent=11 // pred_fallthru
        _
      // Predicated region
      $region25: #{tpu_custom_call.1} parent=11 // pred_check
        %p259 = pneg %p125
      $region26: #{tpu_custom_call.1} parent=11 // pred_check_branch
        %261 = sbr.rel (%p259) target = $region28
      $region27: #{tpu_custom_call.1} parent=11 // pred_region
        _
      $region28: #{tpu_custom_call.1} parent=11 // pred_fallthru
        _
      // Predicated region
      $region29: #{tpu_custom_call.1} parent=11 // pred_check
        %p262 = pneg %p146
      $region30: #{tpu_custom_call.1} parent=11 // pred_check_branch
        %264 = sbr.rel (%p262) target = $region32
      $region31: #{tpu_custom_call.1} parent=11 // pred_region
        _
      $region32: #{tpu_custom_call.1} parent=11 // pred_fallthru
        _
      // Predicated region
      $region33: #{tpu_custom_call.1} parent=11 // pred_check
        %p265 = pneg %p167
      $region34: #{tpu_custom_call.1} parent=11 // pred_check_branch
        %267 = sbr.rel (%p265) target = $region36
      $region35: #{tpu_custom_call.1} parent=11 // pred_region
        _
      $region36: #{tpu_custom_call.1} parent=11 // pred_fallthru
        _
      // Predicated region
      $region37: #{tpu_custom_call.1} parent=11 // pred_check
        %p268 = pneg %p188
      $region38: #{tpu_custom_call.1} parent=11 // pred_check_branch
        %270 = sbr.rel (%p268) target = $region40
      $region39: #{tpu_custom_call.1} parent=11 // pred_region
        _
      $region40: #{tpu_custom_call.1} parent=11 // pred_fallthru
        _
      // Predicated region
      $region41: #{tpu_custom_call.1} parent=11 // pred_check
        %p271 = pneg %p209
      $region42: #{tpu_custom_call.1} parent=11 // pred_check_branch
        %273 = sbr.rel (%p271) target = $region44
      $region43: #{tpu_custom_call.1} parent=11 // pred_region
        _
      $region44: #{tpu_custom_call.1} parent=11 // pred_fallthru
        _
    $region12: #{tpu_custom_call.1} parent=5 // pred_fallthru
      _
    %p274 = scmp.lt.s32.totalorder %s15, 2
    // Predicated region
    $region45: #{tpu_custom_call.1} parent=5 // pred_check
      %p275 = pneg %p274
    $region46: #{tpu_custom_call.1} parent=5 // pred_check_branch
      %277 = sbr.rel (%p275) target = $region48
    $region47: #{tpu_custom_call.1} parent=5 // pred_region
      // Predicated region
      $region49: #{tpu_custom_call.1} parent=47 // pred_check
        %p278 = pneg %p35
      $region50: #{tpu_custom_call.1} parent=47 // pred_check_branch
        %280 = sbr.rel (%p278) target = $region52
      $region51: #{tpu_custom_call.1} parent=47 // pred_region
        %s281 = smul.u32 16, %s15
        %p282 = scmp.lt.s32.totalorder %s281, 31
        %s283 = scalar_select %p282, %s281, 31
        %s284 = smul.addr %s283, 8
        %s285 = scalar_lea.vmem %s0, %s284
        %s286 = smul.u32 16, %s15
      $region52: #{tpu_custom_call.1} parent=47 // pred_fallthru
        _
    $region48: #{tpu_custom_call.1} parent=5 // pred_fallthru
      _
    %p287 = scmp.le.s32.totalorder 1, %s15
    %p288 = scmp.lt.s32.totalorder %s15, 3
    %p289 = pnand %p287, %p288
    %p290 = pneg %p289
    // Predicated region
    $region53: #{tpu_custom_call.1} parent=5 // pred_check
      _
    $region54: #{tpu_custom_call.1} parent=5 // pred_check_branch
      %292 = sbr.rel (%p289) target = $region56
    $region55: #{tpu_custom_call.1} parent=5 // pred_region
      %s293 = ssub.s32 %s15, 1
      %s294 = smul.u32 16, %s20
      %p295 = scmp.lt.s32.totalorder %s294, 31
      %s296 = scalar_select %p295, %s294, 31
      %s297 = smul.addr %s296, 8
      %s298 = scalar_lea.vmem %s0, %s297
      %p299 = pneg %p41
      %p300 = pneg %p38
      %p301 = pneg %p62
      %p302 = pneg %p59
      %p303 = pneg %p83
      %p304 = pneg %p80
      %p305 = pneg %p104
      %p306 = pneg %p101
      %p307 = pneg %p125
      %p308 = pneg %p122
      %p309 = pneg %p146
      %p310 = pneg %p143
      %p311 = pneg %p167
      %p312 = pneg %p164
      %p313 = pneg %p188
      %p314 = pneg %p185
      %p315 = pneg %p209
      %p316 = pneg %p206
      %p317 = pneg %p235
      %p318 = pneg %p232
      %s319 = smul.u32 16, %s20
      %p320 = scmp.lt.s32.totalorder %s319, 31
      %s321 = scalar_select %p320, %s319, 31
      %s322 = smul.addr %s321, 8
      %s323 = scalar_lea.vmem %s9, %s322
      %s324 = smul.u32 16, %s20
      %p325 = scmp.lt.s32.totalorder %s324, 31
      %s326 = scalar_select %p325, %s324, 31
      %s327 = smul.addr %s326, 8
      %s328 = scalar_lea.vmem %s0, %s327
      %s329 = smul.u32 16, %s20
      %s330 = smul.u32 16, %s20
      %p331 = scmp.lt.s32.totalorder %s330, 31
      %s332 = scalar_select %p331, %s330, 31
      %s333 = smul.addr %s332, 8
      %s334 = scalar_lea.vmem %s9, %s333
      %s335 = smul.u32 16, %s20
      %v336 = vld [vmem:[%s328] sm:$0xff]
      %v337 = vld [vmem:[%s328 + $0x8] sm:$0xff]
      %v338 = vld [vmem:[%s328 + $0x10] sm:$0xff]
      %v339 = vld [vmem:[%s328 + $0x18] sm:$0xff]
      %v340 = vld [vmem:[%s328 + $0x20] sm:$0xff]
      %v341 = vld [vmem:[%s328 + $0x28] sm:$0xff]
      %v342 = vld [vmem:[%s328 + $0x30] sm:$0xff]
      %v343 = vld [vmem:[%s328 + $0x38] sm:$0xff]
      %v344 = vld [vmem:[%s328 + $0x40] sm:$0xff]
      %v345 = vld [vmem:[%s328 + $0x48] sm:$0xff]
      %v346 = vld [vmem:[%s328 + $0x50] sm:$0xff]
      %v347 = vld [vmem:[%s328 + $0x58] sm:$0xff]
      %v348 = vld [vmem:[%s328 + $0x60] sm:$0xff]
      %v349 = vld [vmem:[%s328 + $0x68] sm:$0xff]
      %v350 = vld [vmem:[%s328 + $0x70] sm:$0xff]
      %v351 = vld [vmem:[%s328 + $0x78] sm:$0xff]
      %v352 = vld [vmem:[%s1] sm:$0xff]
      %v353 = vld [vmem:[%s1 + $0x8] sm:$0xff]
      %v354 = vld [vmem:[%s1 + $0x10] sm:$0xff]
      %v355 = vld [vmem:[%s1 + $0x18] sm:$0xff]
      %v356 = vld [vmem:[%s2] sm:$0x3]
      %v358 = vlaneseq
      %v359 = vshrl.u32 %v358, 7
      %v360 = vsub.s32 0, %v359
      %v361 = vrot.slane %v356, %v360
      %v362 = vlaneseq
      %v363 = vshrl.u32 %v362, 7
      %v364 = vsub.s32 1, %v363
      %v365 = vrot.slane %v356, %v364
      %vm368 = vcmask 130048
      %v370 = vsel %vm368, %v336, 0
      %v373 = vsel %vm368, %v337, 0
      %v376 = vsel %vm368, %v338, 0
      %v379 = vsel %vm368, %v339, 0
      %v382 = vsel %vm368, %v340, 0
      %v385 = vsel %vm368, %v341, 0
      %v388 = vsel %vm368, %v342, 0
      %v391 = vsel %vm368, %v343, 0
      %v394 = vsel %vm368, %v344, 0
      %v397 = vsel %vm368, %v345, 0
      %v400 = vsel %vm368, %v346, 0
      %v403 = vsel %vm368, %v347, 0
      %v406 = vsel %vm368, %v348, 0
      %v409 = vsel %vm368, %v349, 0
      %v412 = vsel %vm368, %v350, 0
      %v415 = vsel %vm368, %v351, 0
      %417 = vmatprep.subr.mxu0 %v353
      %418 = vmatpush1.msra.mxu0 %v352
      %419 = vmatprep.subr.mxu0 %v355
      %420 = vmatpush1.msra.mxu0 %v354
      %421 = vmatprep.subr.mxu0 0.0
      %422 = vmatpush1.msra.mxu0 0.0
      %423 = vmatprep.subr.mxu0 0.0
      %424 = vmatpush1.msra.mxu0 0.0
      %425 = vmatprep.subr.mxu0 0.0
      %426 = vmatpush1.msra.mxu0 0.0
      %427 = vmatprep.subr.mxu0 0.0
      %428 = vmatpush1.msra.mxu0 0.0
      %429 = vmatprep.subr.mxu0 0.0
      %430 = vmatpush1.msra.mxu0 0.0
      %431 = vmatprep.subr.mxu0 0.0
      %432 = vmatpush1.msra.mxu0 0.0
      %433 = vmatprep.subr.mxu0 0.0
      %434 = vmatpush1.msra.mxu0 0.0
      %435 = vmatprep.subr.mxu0 0.0
      %436 = vmatpush1.msra.mxu0 0.0
      %437 = vmatprep.subr.mxu0 0.0
      %438 = vmatpush1.msra.mxu0 0.0
      %439 = vmatprep.subr.mxu0 0.0
      %440 = vmatpush1.msra.mxu0 0.0
      %441 = vmatprep.subr.mxu0 0.0
      %442 = vmatpush1.msra.mxu0 0.0
      %443 = vmatprep.subr.mxu0 0.0
      %444 = vmatpush1.msra.mxu0 0.0
      %445 = vmatprep.subr.mxu0 0.0
      %446 = vmatpush1.msra.mxu0 0.0
      %447 = vmatprep.subr.mxu0 0.0
      %448 = vmatpush1.msra.mxu0 0.0
      %449 = vmatprep.subr.mxu0 0.0
      %450 = vmatpush1.msra.mxu0 0.0
      %451 = vmatprep.subr.mxu0 0.0
      %452 = vmatpush1.msra.mxu0 0.0
      %453 = vmatprep.subr.mxu0 0.0
      %454 = vmatpush1.msra.mxu0 0.0
      %455 = vmatprep.subr.mxu0 0.0
      %456 = vmatpush1.msra.mxu0 0.0
      %457 = vmatprep.subr.mxu0 0.0
      %458 = vmatpush1.msra.mxu0 0.0
      %459 = vmatprep.subr.mxu0 0.0
      %460 = vmatpush1.msra.mxu0 0.0
      %461 = vmatprep.subr.mxu0 0.0
      %462 = vmatpush1.msra.mxu0 0.0
      %463 = vmatprep.subr.mxu0 0.0
      %464 = vmatpush1.msra.mxu0 0.0
      %465 = vmatprep.subr.mxu0 0.0
      %466 = vmatpush1.msra.mxu0 0.0
      %467 = vmatprep.subr.mxu0 0.0
      %468 = vmatpush1.msra.mxu0 0.0
      %469 = vmatprep.subr.mxu0 0.0
      %470 = vmatpush1.msra.mxu0 0.0
      %471 = vmatprep.subr.mxu0 0.0
      %472 = vmatpush1.msra.mxu0 0.0
      %473 = vmatprep.subr.mxu0 0.0
      %474 = vmatpush1.msra.mxu0 0.0
      %475 = vmatprep.subr.mxu0 0.0
      %476 = vmatpush1.msra.mxu0 0.0
      %477 = vmatprep.subr.mxu0 0.0
      %478 = vmatpush1.msra.mxu0 0.0
      %479 = vmatprep.subr.mxu0 0.0
      %480 = vmatpush1.msra.mxu0 0.0
      %481 = vmatprep.mubr.f32.mxu0 0.0
      %482 = vmatmul.mubr.f32.gmra.mrb[0].mxu0 %v370
      %v483 = vpop.f32.mrb[0].mxu0
      %v484 = vadd.f32 %v361, %v483
      %v485 = vpop.f32.mrb[0].mxu0
      %v486 = vadd.f32 %v365, %v485
      %487 = vmatprep.mubr.f32.mxu0 0.0
      %488 = vmatmul.mubr.f32.gmra.mrb[0].mxu0 %v373
      %v489 = vpop.f32.mrb[0].mxu0
      %v490 = vadd.f32 %v361, %v489
      %v491 = vpop.f32.mrb[0].mxu0
      %v492 = vadd.f32 %v365, %v491
      %493 = vmatprep.mubr.f32.mxu0 0.0
      %494 = vmatmul.mubr.f32.gmra.mrb[0].mxu0 %v376
      %v495 = vpop.f32.mrb[0].mxu0
      %v496 = vadd.f32 %v361, %v495
      %v497 = vpop.f32.mrb[0].mxu0
      %v498 = vadd.f32 %v365, %v497
      %499 = vmatprep.mubr.f32.mxu0 0.0
      %500 = vmatmul.mubr.f32.gmra.mrb[0].mxu0 %v379
      %v501 = vpop.f32.mrb[0].mxu0
      %v502 = vadd.f32 %v361, %v501
      %v503 = vpop.f32.mrb[0].mxu0
      %v504 = vadd.f32 %v365, %v503
      %505 = vmatprep.mubr.f32.mxu0 0.0
      %506 = vmatmul.mubr.f32.gmra.mrb[0].mxu0 %v382
      %v507 = vpop.f32.mrb[0].mxu0
      %v508 = vadd.f32 %v361, %v507
      %v509 = vpop.f32.mrb[0].mxu0
      %v510 = vadd.f32 %v365, %v509
      %511 = vmatprep.mubr.f32.mxu0 0.0
      %512 = vmatmul.mubr.f32.gmra.mrb[0].mxu0 %v385
      %v513 = vpop.f32.mrb[0].mxu0
      %v514 = vadd.f32 %v361, %v513
      %v515 = vpop.f32.mrb[0].mxu0
      %v516 = vadd.f32 %v365, %v515
      %517 = vmatprep.mubr.f32.mxu0 0.0
      %518 = vmatmul.mubr.f32.gmra.mrb[0].mxu0 %v388
      %v519 = vpop.f32.mrb[0].mxu0
      %v520 = vadd.f32 %v361, %v519
      %v521 = vpop.f32.mrb[0].mxu0
      %v522 = vadd.f32 %v365, %v521
      %523 = vmatprep.mubr.f32.mxu0 0.0
      %524 = vmatmul.mubr.f32.gmra.mrb[0].mxu0 %v391
      %v525 = vpop.f32.mrb[0].mxu0
      %v526 = vadd.f32 %v361, %v525
      %v527 = vpop.f32.mrb[0].mxu0
      %v528 = vadd.f32 %v365, %v527
      %529 = vmatprep.mubr.f32.mxu0 0.0
      %530 = vmatmul.mubr.f32.gmra.mrb[0].mxu0 %v394
      %v531 = vpop.f32.mrb[0].mxu0
      %v532 = vadd.f32 %v361, %v531
      %v533 = vpop.f32.mrb[0].mxu0
      %v534 = vadd.f32 %v365, %v533
      %535 = vmatprep.mubr.f32.mxu0 0.0
      %536 = vmatmul.mubr.f32.gmra.mrb[0].mxu0 %v397
      %v537 = vpop.f32.mrb[0].mxu0
      %v538 = vadd.f32 %v361, %v537
      %v539 = vpop.f32.mrb[0].mxu0
      %v540 = vadd.f32 %v365, %v539
      %541 = vmatprep.mubr.f32.mxu0 0.0
      %542 = vmatmul.mubr.f32.gmra.mrb[0].mxu0 %v400
      %v543 = vpop.f32.mrb[0].mxu0
      %v544 = vadd.f32 %v361, %v543
      %v545 = vpop.f32.mrb[0].mxu0
      %v546 = vadd.f32 %v365, %v545
      %547 = vmatprep.mubr.f32.mxu0 0.0
      %548 = vmatmul.mubr.f32.gmra.mrb[0].mxu0 %v403
      %v549 = vpop.f32.mrb[0].mxu0
      %v550 = vadd.f32 %v361, %v549
      %v551 = vpop.f32.mrb[0].mxu0
      %v552 = vadd.f32 %v365, %v551
      %553 = vmatprep.mubr.f32.mxu0 0.0
      %554 = vmatmul.mubr.f32.gmra.mrb[0].mxu0 %v406
      %v555 = vpop.f32.mrb[0].mxu0
      %v556 = vadd.f32 %v361, %v555
      %v557 = vpop.f32.mrb[0].mxu0
      %v558 = vadd.f32 %v365, %v557
      %559 = vmatprep.mubr.f32.mxu0 0.0
      %560 = vmatmul.mubr.f32.gmra.mrb[0].mxu0 %v409
      %v561 = vpop.f32.mrb[0].mxu0
      %v562 = vadd.f32 %v361, %v561
      %v563 = vpop.f32.mrb[0].mxu0
      %v564 = vadd.f32 %v365, %v563
      %565 = vmatprep.mubr.f32.mxu0 0.0
      %566 = vmatmul.mubr.f32.gmra.mrb[0].mxu0 %v412
      %v567 = vpop.f32.mrb[0].mxu0
      %v568 = vadd.f32 %v361, %v567
      %v569 = vpop.f32.mrb[0].mxu0
      %v570 = vadd.f32 %v365, %v569
      %571 = vmatprep.mubr.f32.mxu0 0.0
      %572 = vmatmul.mubr.f32.gmra.mrb[0].mxu0 %v415
      %v573 = vpop.f32.mrb[0].mxu0
      %v574 = vadd.f32 %v361, %v573
      %v575 = vpop.f32.mrb[0].mxu0
      %v576 = vadd.f32 %v365, %v575
      %577 = vdwg.mxu0
      %v578 = vld [vmem:[%s3] sm:$0xff]
      %v579 = vld [vmem:[%s3 + $0x8] sm:$0xff]
      %v580 = vld [vmem:[%s3 + $0x10] sm:$0xff]
      %v581 = vld [vmem:[%s3 + $0x18] sm:$0xff]
      %v582 = vld [vmem:[%s3 + $0x20] sm:$0xff]
      %v583 = vld [vmem:[%s3 + $0x28] sm:$0xff]
      %v584 = vld [vmem:[%s3 + $0x30] sm:$0xff]
      %v585 = vld [vmem:[%s3 + $0x38] sm:$0xff]
      %v586 = vld [vmem:[%s3 + $0x40] sm:$0xff]
      %v587 = vld [vmem:[%s3 + $0x48] sm:$0xff]
      %v588 = vld [vmem:[%s3 + $0x50] sm:$0xff]
      %v589 = vld [vmem:[%s3 + $0x58] sm:$0xff]
      %v590 = vld [vmem:[%s3 + $0x60] sm:$0xff]
      %v591 = vld [vmem:[%s3 + $0x68] sm:$0xff]
      %v592 = vld [vmem:[%s3 + $0x70] sm:$0xff]
      %v593 = vld [vmem:[%s3 + $0x78] sm:$0xff]
      %v594 = vld [vmem:[%s3 + $0x80] sm:$0xff]
      %v595 = vld [vmem:[%s3 + $0x88] sm:$0xff]
      %v596 = vld [vmem:[%s3 + $0x90] sm:$0xff]
      %v597 = vld [vmem:[%s3 + $0x98] sm:$0xff]
      %v598 = vld [vmem:[%s3 + $0xa0] sm:$0xff]
      %v599 = vld [vmem:[%s3 + $0xa8] sm:$0xff]
      %v600 = vld [vmem:[%s3 + $0xb0] sm:$0xff]
      %v601 = vld [vmem:[%s3 + $0xb8] sm:$0xff]
      %v602 = vld [vmem:[%s3 + $0xc0] sm:$0xff]
      %v603 = vld [vmem:[%s4] sm:$0x1]
      %v605 = vlaneseq
      %v606 = vshrl.u32 %v605, 7
      %v607 = vsub.s32 0, %v606
      %v608 = vrot.slane %v603, %v607
      %vm610 = vcmask 588800
      %v612 = vsel %vm610, %v486, 0
      %v615 = vsel %vm610, %v492, 0
      %v618 = vsel %vm610, %v498, 0
      %v621 = vsel %vm610, %v504, 0
      %v624 = vsel %vm610, %v510, 0
      %v627 = vsel %vm610, %v516, 0
      %v630 = vsel %vm610, %v522, 0
      %v633 = vsel %vm610, %v528, 0
      %v636 = vsel %vm610, %v534, 0
      %v639 = vsel %vm610, %v540, 0
      %v642 = vsel %vm610, %v546, 0
      %v645 = vsel %vm610, %v552, 0
      %v648 = vsel %vm610, %v558, 0
      %v651 = vsel %vm610, %v564, 0
      %v654 = vsel %vm610, %v570, 0
      %v657 = vsel %vm610, %v576, 0
      %659 = vmatprep.subr.mxu0 0.0
      %660 = vmatpush1.msra.mxu0 %v578
      %661 = vmatprep.subr.mxu0 0.0
      %662 = vmatpush1.msra.mxu0 %v579
      %663 = vmatprep.subr.mxu0 0.0
      %664 = vmatpush1.msra.mxu0 %v580
      %665 = vmatprep.subr.mxu0 0.0
      %666 = vmatpush1.msra.mxu0 %v581
      %667 = vmatprep.subr.mxu0 0.0
      %668 = vmatpush1.msra.mxu0 %v582
      %669 = vmatprep.subr.mxu0 0.0
      %670 = vmatpush1.msra.mxu0 %v583
      %671 = vmatprep.subr.mxu0 0.0
      %672 = vmatpush1.msra.mxu0 %v584
      %673 = vmatprep.subr.mxu0 0.0
      %674 = vmatpush1.msra.mxu0 %v585
      %675 = vmatprep.subr.mxu0 0.0
      %676 = vmatpush1.msra.mxu0 %v586
      %677 = vmatprep.subr.mxu0 0.0
      %678 = vmatpush1.msra.mxu0 %v587
      %679 = vmatprep.subr.mxu0 0.0
      %680 = vmatpush1.msra.mxu0 %v588
      %681 = vmatprep.subr.mxu0 0.0
      %682 = vmatpush1.msra.mxu0 %v589
      %683 = vmatprep.subr.mxu0 0.0
      %684 = vmatpush1.msra.mxu0 %v590
      %685 = vmatprep.subr.mxu0 0.0
      %686 = vmatpush1.msra.mxu0 %v591
      %687 = vmatprep.subr.mxu0 0.0
      %688 = vmatpush1.msra.mxu0 %v592
      %689 = vmatprep.subr.mxu0 0.0
      %690 = vmatpush1.msra.mxu0 %v593
      %691 = vmatprep.subr.mxu0 0.0
      %692 = vmatpush1.msra.mxu0 %v594
      %693 = vmatprep.subr.mxu0 0.0
      %694 = vmatpush1.msra.mxu0 %v595
      %695 = vmatprep.subr.mxu0 0.0
      %696 = vmatpush1.msra.mxu0 %v596
      %697 = vmatprep.subr.mxu0 0.0
      %698 = vmatpush1.msra.mxu0 %v597
      %699 = vmatprep.subr.mxu0 0.0
      %700 = vmatpush1.msra.mxu0 %v598
      %701 = vmatprep.subr.mxu0 0.0
      %702 = vmatpush1.msra.mxu0 %v599
      %703 = vmatprep.subr.mxu0 0.0
      %704 = vmatpush1.msra.mxu0 %v600
      %705 = vmatprep.subr.mxu0 0.0
      %706 = vmatpush1.msra.mxu0 %v601
      %707 = vmatprep.subr.mxu0 0.0
      %708 = vmatpush1.msra.mxu0 %v602
      %709 = vmatprep.subr.mxu0 0.0
      %710 = vmatpush1.msra.mxu0 0.0
      %711 = vmatprep.subr.mxu0 0.0
      %712 = vmatpush1.msra.mxu0 0.0
      %713 = vmatprep.subr.mxu0 0.0
      %714 = vmatpush1.msra.mxu0 0.0
      %715 = vmatprep.subr.mxu0 0.0
      %716 = vmatpush1.msra.mxu0 0.0
      %717 = vmatprep.subr.mxu0 0.0
      %718 = vmatpush1.msra.mxu0 0.0
      %719 = vmatprep.subr.mxu0 0.0
      %720 = vmatpush1.msra.mxu0 0.0
      %721 = vmatprep.subr.mxu0 0.0
      %722 = vmatpush1.msra.mxu0 0.0
      %723 = vmatprep.mubr.f32.mxu0 %v612
      %724 = vmatmul.mubr.f32.gmra.mrb[0].mxu0 %v484
      %v725 = vpop.f32.mrb[0].mxu0
      %v726 = vadd.f32 %v608, %v725
      %v727 = vpop.f32.mrb[0].mxu0
      %728 = vmatprep.mubr.f32.mxu0 %v615
      %729 = vmatmul.mubr.f32.gmra.mrb[0].mxu0 %v490
      %v730 = vpop.f32.mrb[0].mxu0
      %v731 = vadd.f32 %v608, %v730
      %v732 = vpop.f32.mrb[0].mxu0
      %733 = vmatprep.mubr.f32.mxu0 %v618
      %734 = vmatmul.mubr.f32.gmra.mrb[0].mxu0 %v496
      %v735 = vpop.f32.mrb[0].mxu0
      %v736 = vadd.f32 %v608, %v735
      %v737 = vpop.f32.mrb[0].mxu0
      %738 = vmatprep.mubr.f32.mxu0 %v621
      %739 = vmatmul.mubr.f32.gmra.mrb[0].mxu0 %v502
      %v740 = vpop.f32.mrb[0].mxu0
      %v741 = vadd.f32 %v608, %v740
      %v742 = vpop.f32.mrb[0].mxu0
      %743 = vmatprep.mubr.f32.mxu0 %v624
      %744 = vmatmul.mubr.f32.gmra.mrb[0].mxu0 %v508
      %v745 = vpop.f32.mrb[0].mxu0
      %v746 = vadd.f32 %v608, %v745
      %v747 = vpop.f32.mrb[0].mxu0
      %748 = vmatprep.mubr.f32.mxu0 %v627
      %749 = vmatmul.mubr.f32.gmra.mrb[0].mxu0 %v514
      %v750 = vpop.f32.mrb[0].mxu0
      %v751 = vadd.f32 %v608, %v750
      %v752 = vpop.f32.mrb[0].mxu0
      %753 = vmatprep.mubr.f32.mxu0 %v630
      %754 = vmatmul.mubr.f32.gmra.mrb[0].mxu0 %v520
      %v755 = vpop.f32.mrb[0].mxu0
      %v756 = vadd.f32 %v608, %v755
      %v757 = vpop.f32.mrb[0].mxu0
      %758 = vmatprep.mubr.f32.mxu0 %v633
      %759 = vmatmul.mubr.f32.gmra.mrb[0].mxu0 %v526
      %v760 = vpop.f32.mrb[0].mxu0
      %v761 = vadd.f32 %v608, %v760
      %v762 = vpop.f32.mrb[0].mxu0
      %763 = vmatprep.mubr.f32.mxu0 %v636
      %764 = vmatmul.mubr.f32.gmra.mrb[0].mxu0 %v532
      %v765 = vpop.f32.mrb[0].mxu0
      %v766 = vadd.f32 %v608, %v765
      %v767 = vpop.f32.mrb[0].mxu0
      %768 = vmatprep.mubr.f32.mxu0 %v639
      %769 = vmatmul.mubr.f32.gmra.mrb[0].mxu0 %v538
      %v770 = vpop.f32.mrb[0].mxu0
      %v771 = vadd.f32 %v608, %v770
      %v772 = vpop.f32.mrb[0].mxu0
      %773 = vmatprep.mubr.f32.mxu0 %v642
      %774 = vmatmul.mubr.f32.gmra.mrb[0].mxu0 %v544
      %v775 = vpop.f32.mrb[0].mxu0
      %v776 = vadd.f32 %v608, %v775
      %v777 = vpop.f32.mrb[0].mxu0
      %778 = vmatprep.mubr.f32.mxu0 %v645
      %779 = vmatmul.mubr.f32.gmra.mrb[0].mxu0 %v550
      %v780 = vpop.f32.mrb[0].mxu0
      %v781 = vadd.f32 %v608, %v780
      %v782 = vpop.f32.mrb[0].mxu0
      %783 = vmatprep.mubr.f32.mxu0 %v648
      %784 = vmatmul.mubr.f32.gmra.mrb[0].mxu0 %v556
      %v785 = vpop.f32.mrb[0].mxu0
      %v786 = vadd.f32 %v608, %v785
      %v787 = vpop.f32.mrb[0].mxu0
      %788 = vmatprep.mubr.f32.mxu0 %v651
      %789 = vmatmul.mubr.f32.gmra.mrb[0].mxu0 %v562
      %v790 = vpop.f32.mrb[0].mxu0
      %v791 = vadd.f32 %v608, %v790
      %v792 = vpop.f32.mrb[0].mxu0
      %793 = vmatprep.mubr.f32.mxu0 %v654
      %794 = vmatmul.mubr.f32.gmra.mrb[0].mxu0 %v568
      %v795 = vpop.f32.mrb[0].mxu0
      %v796 = vadd.f32 %v608, %v795
      %v797 = vpop.f32.mrb[0].mxu0
      %798 = vmatprep.mubr.f32.mxu0 %v657
      %799 = vmatmul.mubr.f32.gmra.mrb[0].mxu0 %v574
      %v800 = vpop.f32.mrb[0].mxu0
      %v801 = vadd.f32 %v608, %v800
      %v802 = vpop.f32.mrb[0].mxu0
      %803 = vdwg.mxu0
      %v804 = vtanh.pop %v726
      %v805 = vtanh.pop %v731
      %v806 = vtanh.pop %v736
      %v807 = vtanh.pop %v741
      %v808 = vtanh.pop %v746
      %v809 = vtanh.pop %v751
      %v810 = vtanh.pop %v756
      %v811 = vtanh.pop %v761
      %v812 = vtanh.pop %v766
      %v813 = vtanh.pop %v771
      %v814 = vtanh.pop %v776
      %v815 = vtanh.pop %v781
      %v816 = vtanh.pop %v786
      %v817 = vtanh.pop %v791
      %v818 = vtanh.pop %v796
      %v819 = vtanh.pop %v801
      %v820 = vld [vmem:[%s5] sm:$0xff]
      %v821 = vld [vmem:[%s5 + $0x8] sm:$0xff]
      %v822 = vld [vmem:[%s5 + $0x10] sm:$0xff]
      %v823 = vld [vmem:[%s5 + $0x18] sm:$0xff]
      %v824 = vld [vmem:[%s5 + $0x20] sm:$0xff]
      %v825 = vld [vmem:[%s5 + $0x28] sm:$0xff]
      %v826 = vld [vmem:[%s5 + $0x30] sm:$0xff]
      %v827 = vld [vmem:[%s5 + $0x38] sm:$0xff]
      %v828 = vld [vmem:[%s5 + $0x40] sm:$0xff]
      %v829 = vld [vmem:[%s5 + $0x48] sm:$0xff]
      %v830 = vld [vmem:[%s5 + $0x50] sm:$0xff]
      %v831 = vld [vmem:[%s5 + $0x58] sm:$0xff]
      %v832 = vld [vmem:[%s5 + $0x60] sm:$0xf]
      %v833 = vld [vmem:[%s6] sm:$0x1]
      %v835 = vlaneseq
      %v836 = vshrl.u32 %v835, 7
      %v837 = vsub.s32 0, %v836
      %v838 = vrot.slane %v833, %v837
      %vm840 = vcmask 818176
      %v842 = vsel %vm840, %v804, 0
      %v845 = vsel %vm840, %v805, 0
      %v848 = vsel %vm840, %v806, 0
      %v851 = vsel %vm840, %v807, 0
      %v854 = vsel %vm840, %v808, 0
      %v857 = vsel %vm840, %v809, 0
      %v860 = vsel %vm840, %v810, 0
      %v863 = vsel %vm840, %v811, 0
      %v866 = vsel %vm840, %v812, 0
      %v869 = vsel %vm840, %v813, 0
      %v872 = vsel %vm840, %v814, 0
      %v875 = vsel %vm840, %v815, 0
      %v878 = vsel %vm840, %v816, 0
      %v881 = vsel %vm840, %v817, 0
      %v884 = vsel %vm840, %v818, 0
      %v887 = vsel %vm840, %v819, 0
      %vm889 = vcmask 1043456
      %v891 = vsel %vm889, %v832, 0
      %893 = vmatprep.subr.mxu0 0.0
      %894 = vmatpush1.msra.mxu0 %v820
      %895 = vmatprep.subr.mxu0 0.0
      %896 = vmatpush1.msra.mxu0 %v821
      %897 = vmatprep.subr.mxu0 0.0
      %898 = vmatpush1.msra.mxu0 %v822
      %899 = vmatprep.subr.mxu0 0.0
      %900 = vmatpush1.msra.mxu0 %v823
      %901 = vmatprep.subr.mxu0 0.0
      %902 = vmatpush1.msra.mxu0 %v824
      %903 = vmatprep.subr.mxu0 0.0
      %904 = vmatpush1.msra.mxu0 %v825
      %905 = vmatprep.subr.mxu0 0.0
      %906 = vmatpush1.msra.mxu0 %v826
      %907 = vmatprep.subr.mxu0 0.0
      %908 = vmatpush1.msra.mxu0 %v827
      %909 = vmatprep.subr.mxu0 0.0
      %910 = vmatpush1.msra.mxu0 %v828
      %911 = vmatprep.subr.mxu0 0.0
      %912 = vmatpush1.msra.mxu0 %v829
      %913 = vmatprep.subr.mxu0 0.0
      %914 = vmatpush1.msra.mxu0 %v830
      %915 = vmatprep.subr.mxu0 0.0
      %916 = vmatpush1.msra.mxu0 %v831
      %917 = vmatprep.subr.mxu0 0.0
      %918 = vmatpush1.msra.mxu0 %v891
      %919 = vmatprep.subr.mxu0 0.0
      %920 = vmatpush1.msra.mxu0 0.0
      %921 = vmatprep.subr.mxu0 0.0
      %922 = vmatpush1.msra.mxu0 0.0
      %923 = vmatprep.subr.mxu0 0.0
      %924 = vmatpush1.msra.mxu0 0.0
      %925 = vmatprep.subr.mxu0 0.0
      %926 = vmatpush1.msra.mxu0 0.0
      %927 = vmatprep.subr.mxu0 0.0
      %928 = vmatpush1.msra.mxu0 0.0
      %929 = vmatprep.subr.mxu0 0.0
      %930 = vmatpush1.msra.mxu0 0.0
      %931 = vmatprep.subr.mxu0 0.0
      %932 = vmatpush1.msra.mxu0 0.0
      %933 = vmatprep.subr.mxu0 0.0
      %934 = vmatpush1.msra.mxu0 0.0
      %935 = vmatprep.subr.mxu0 0.0
      %936 = vmatpush1.msra.mxu0 0.0
      %937 = vmatprep.subr.mxu0 0.0
      %938 = vmatpush1.msra.mxu0 0.0
      %939 = vmatprep.subr.mxu0 0.0
      %940 = vmatpush1.msra.mxu0 0.0
      %941 = vmatprep.subr.mxu0 0.0
      %942 = vmatpush1.msra.mxu0 0.0
      %943 = vmatprep.subr.mxu0 0.0
      %944 = vmatpush1.msra.mxu0 0.0
      %945 = vmatprep.subr.mxu0 0.0
      %946 = vmatpush1.msra.mxu0 0.0
      %947 = vmatprep.subr.mxu0 0.0
      %948 = vmatpush1.msra.mxu0 0.0
      %949 = vmatprep.subr.mxu0 0.0
      %950 = vmatpush1.msra.mxu0 0.0
      %951 = vmatprep.subr.mxu0 0.0
      %952 = vmatpush1.msra.mxu0 0.0
      %953 = vmatprep.subr.mxu0 0.0
      %954 = vmatpush1.msra.mxu0 0.0
      %955 = vmatprep.subr.mxu0 0.0
      %956 = vmatpush1.msra.mxu0 0.0
      %957 = vmatprep.mubr.f32.mxu0 0.0
      %958 = vmatmul.mubr.f32.gmra.mrb[0].mxu0 %v842
      %v959 = vpop.f32.mrb[0].mxu0
      %v960 = vadd.f32 %v838, %v959
      %v961 = vpop.f32.mrb[0].mxu0
      %962 = vmatprep.mubr.f32.mxu0 0.0
      %963 = vmatmul.mubr.f32.gmra.mrb[0].mxu0 %v845
      %v964 = vpop.f32.mrb[0].mxu0
      %v965 = vadd.f32 %v838, %v964
      %v966 = vpop.f32.mrb[0].mxu0
      %967 = vmatprep.mubr.f32.mxu0 0.0
      %968 = vmatmul.mubr.f32.gmra.mrb[0].mxu0 %v848
      %v969 = vpop.f32.mrb[0].mxu0
      %v970 = vadd.f32 %v838, %v969
      %v971 = vpop.f32.mrb[0].mxu0
      %972 = vmatprep.mubr.f32.mxu0 0.0
      %973 = vmatmul.mubr.f32.gmra.mrb[0].mxu0 %v851
      %v974 = vpop.f32.mrb[0].mxu0
      %v975 = vadd.f32 %v838, %v974
      %v976 = vpop.f32.mrb[0].mxu0
      %977 = vmatprep.mubr.f32.mxu0 0.0
      %978 = vmatmul.mubr.f32.gmra.mrb[0].mxu0 %v854
      %v979 = vpop.f32.mrb[0].mxu0
      %v980 = vadd.f32 %v838, %v979
      %v981 = vpop.f32.mrb[0].mxu0
      %982 = vmatprep.mubr.f32.mxu0 0.0
      %983 = vmatmul.mubr.f32.gmra.mrb[0].mxu0 %v857
      %v984 = vpop.f32.mrb[0].mxu0
      %v985 = vadd.f32 %v838, %v984
      %v986 = vpop.f32.mrb[0].mxu0
      %987 = vmatprep.mubr.f32.mxu0 0.0
      %988 = vmatmul.mubr.f32.gmra.mrb[0].mxu0 %v860
      %v989 = vpop.f32.mrb[0].mxu0
      %v990 = vadd.f32 %v838, %v989
      %v991 = vpop.f32.mrb[0].mxu0
      %992 = vmatprep.mubr.f32.mxu0 0.0
      %993 = vmatmul.mubr.f32.gmra.mrb[0].mxu0 %v863
      %v994 = vpop.f32.mrb[0].mxu0
      %v995 = vadd.f32 %v838, %v994
      %v996 = vpop.f32.mrb[0].mxu0
      %997 = vmatprep.mubr.f32.mxu0 0.0
      %998 = vmatmul.mubr.f32.gmra.mrb[0].mxu0 %v866
      %v999 = vpop.f32.mrb[0].mxu0
      %v1000 = vadd.f32 %v838, %v999
      %v1001 = vpop.f32.mrb[0].mxu0
      %1002 = vmatprep.mubr.f32.mxu0 0.0
      %1003 = vmatmul.mubr.f32.gmra.mrb[0].mxu0 %v869
      %v1004 = vpop.f32.mrb[0].mxu0
      %v1005 = vadd.f32 %v838, %v1004
      %v1006 = vpop.f32.mrb[0].mxu0
      %1007 = vmatprep.mubr.f32.mxu0 0.0
      %1008 = vmatmul.mubr.f32.gmra.mrb[0].mxu0 %v872
      %v1009 = vpop.f32.mrb[0].mxu0
      %v1010 = vadd.f32 %v838, %v1009
      %v1011 = vpop.f32.mrb[0].mxu0
      %1012 = vmatprep.mubr.f32.mxu0 0.0
      %1013 = vmatmul.mubr.f32.gmra.mrb[0].mxu0 %v875
      %v1014 = vpop.f32.mrb[0].mxu0
      %v1015 = vadd.f32 %v838, %v1014
      %v1016 = vpop.f32.mrb[0].mxu0
      %1017 = vmatprep.mubr.f32.mxu0 0.0
      %1018 = vmatmul.mubr.f32.gmra.mrb[0].mxu0 %v878
      %v1019 = vpop.f32.mrb[0].mxu0
      %v1020 = vadd.f32 %v838, %v1019
      %v1021 = vpop.f32.mrb[0].mxu0
      %1022 = vmatprep.mubr.f32.mxu0 0.0
      %1023 = vmatmul.mubr.f32.gmra.mrb[0].mxu0 %v881
      %v1024 = vpop.f32.mrb[0].mxu0
      %v1025 = vadd.f32 %v838, %v1024
      %v1026 = vpop.f32.mrb[0].mxu0
      %1027 = vmatprep.mubr.f32.mxu0 0.0
      %1028 = vmatmul.mubr.f32.gmra.mrb[0].mxu0 %v884
      %v1029 = vpop.f32.mrb[0].mxu0
      %v1030 = vadd.f32 %v838, %v1029
      %v1031 = vpop.f32.mrb[0].mxu0
      %1032 = vmatprep.mubr.f32.mxu0 0.0
      %1033 = vmatmul.mubr.f32.gmra.mrb[0].mxu0 %v887
      %v1034 = vpop.f32.mrb[0].mxu0
      %v1035 = vadd.f32 %v838, %v1034
      %v1036 = vpop.f32.mrb[0].mxu0
      %1037 = vdwg.mxu0
      %v1038 = vtanh.pop %v960
      %v1039 = vtanh.pop %v965
      %v1040 = vtanh.pop %v970
      %v1041 = vtanh.pop %v975
      %v1042 = vtanh.pop %v980
      %v1043 = vtanh.pop %v985
      %v1044 = vtanh.pop %v990
      %v1045 = vtanh.pop %v995
      %v1046 = vtanh.pop %v1000
      %v1047 = vtanh.pop %v1005
      %v1048 = vtanh.pop %v1010
      %v1049 = vtanh.pop %v1015
      %v1050 = vtanh.pop %v1020
      %v1051 = vtanh.pop %v1025
      %v1052 = vtanh.pop %v1030
      %v1053 = vtanh.pop %v1035
      %v1054 = vld [vmem:[%s7] sm:$0xff]
      %v1055 = vld [vmem:[%s7 + $0x8] sm:$0xff]
      %v1056 = vld [vmem:[%s7 + $0x10] sm:$0xff]
      %v1057 = vld [vmem:[%s7 + $0x18] sm:$0xff]
      %v1058 = vld [vmem:[%s7 + $0x20] sm:$0xff]
      %v1059 = vld [vmem:[%s7 + $0x28] sm:$0xff]
      %v1060 = vld [vmem:[%s7 + $0x30] sm:$0xff]
      %v1061 = vld [vmem:[%s7 + $0x38] sm:$0xff]
      %v1062 = vld [vmem:[%s7 + $0x40] sm:$0xff]
      %v1063 = vld [vmem:[%s7 + $0x48] sm:$0xff]
      %v1064 = vld [vmem:[%s8] sm:$0x1]
      %v1066 = vlaneseq
      %v1067 = vshrl.u32 %v1066, 7
      %v1068 = vsub.s32 0, %v1067
      %v1069 = vrot.slane %v1064, %v1068
      %vm1071 = vcmask 654336
      %v1073 = vsel %vm1071, %v1038, 0
      %v1076 = vsel %vm1071, %v1039, 0
      %v1079 = vsel %vm1071, %v1040, 0
      %v1082 = vsel %vm1071, %v1041, 0
      %v1085 = vsel %vm1071, %v1042, 0
      %v1088 = vsel %vm1071, %v1043, 0
      %v1091 = vsel %vm1071, %v1044, 0
      %v1094 = vsel %vm1071, %v1045, 0
      %v1097 = vsel %vm1071, %v1046, 0
      %v1100 = vsel %vm1071, %v1047, 0
      %v1103 = vsel %vm1071, %v1048, 0
      %v1106 = vsel %vm1071, %v1049, 0
      %v1109 = vsel %vm1071, %v1050, 0
      %v1112 = vsel %vm1071, %v1051, 0
      %v1115 = vsel %vm1071, %v1052, 0
      %v1118 = vsel %vm1071, %v1053, 0
      %1120 = vmatprep.subr.mxu0 0.0
      %1121 = vmatpush1.msra.mxu0 %v1054
      %1122 = vmatprep.subr.mxu0 0.0
      %1123 = vmatpush1.msra.mxu0 %v1055
      %1124 = vmatprep.subr.mxu0 0.0
      %1125 = vmatpush1.msra.mxu0 %v1056
      %1126 = vmatprep.subr.mxu0 0.0
      %1127 = vmatpush1.msra.mxu0 %v1057
      %1128 = vmatprep.subr.mxu0 0.0
      %1129 = vmatpush1.msra.mxu0 %v1058
      %1130 = vmatprep.subr.mxu0 0.0
      %1131 = vmatpush1.msra.mxu0 %v1059
      %1132 = vmatprep.subr.mxu0 0.0
      %1133 = vmatpush1.msra.mxu0 %v1060
      %1134 = vmatprep.subr.mxu0 0.0
      %1135 = vmatpush1.msra.mxu0 %v1061
      %1136 = vmatprep.subr.mxu0 0.0
      %1137 = vmatpush1.msra.mxu0 %v1062
      %1138 = vmatprep.subr.mxu0 0.0
      %1139 = vmatpush1.msra.mxu0 %v1063
      %1140 = vmatprep.subr.mxu0 0.0
      %1141 = vmatpush1.msra.mxu0 0.0
      %1142 = vmatprep.subr.mxu0 0.0
      %1143 = vmatpush1.msra.mxu0 0.0
      %1144 = vmatprep.subr.mxu0 0.0
      %1145 = vmatpush1.msra.mxu0 0.0
      %1146 = vmatprep.subr.mxu0 0.0
      %1147 = vmatpush1.msra.mxu0 0.0
      %1148 = vmatprep.subr.mxu0 0.0
      %1149 = vmatpush1.msra.mxu0 0.0
      %1150 = vmatprep.subr.mxu0 0.0
      %1151 = vmatpush1.msra.mxu0 0.0
      %1152 = vmatprep.subr.mxu0 0.0
      %1153 = vmatpush1.msra.mxu0 0.0
      %1154 = vmatprep.subr.mxu0 0.0
      %1155 = vmatpush1.msra.mxu0 0.0
      %1156 = vmatprep.subr.mxu0 0.0
      %1157 = vmatpush1.msra.mxu0 0.0
      %1158 = vmatprep.subr.mxu0 0.0
      %1159 = vmatpush1.msra.mxu0 0.0
      %1160 = vmatprep.subr.mxu0 0.0
      %1161 = vmatpush1.msra.mxu0 0.0
      %1162 = vmatprep.subr.mxu0 0.0
      %1163 = vmatpush1.msra.mxu0 0.0
      %1164 = vmatprep.subr.mxu0 0.0
      %1165 = vmatpush1.msra.mxu0 0.0
      %1166 = vmatprep.subr.mxu0 0.0
      %1167 = vmatpush1.msra.mxu0 0.0
      %1168 = vmatprep.subr.mxu0 0.0
      %1169 = vmatpush1.msra.mxu0 0.0
      %1170 = vmatprep.subr.mxu0 0.0
      %1171 = vmatpush1.msra.mxu0 0.0
      %1172 = vmatprep.subr.mxu0 0.0
      %1173 = vmatpush1.msra.mxu0 0.0
      %1174 = vmatprep.subr.mxu0 0.0
      %1175 = vmatpush1.msra.mxu0 0.0
      %1176 = vmatprep.subr.mxu0 0.0
      %1177 = vmatpush1.msra.mxu0 0.0
      %1178 = vmatprep.subr.mxu0 0.0
      %1179 = vmatpush1.msra.mxu0 0.0
      %1180 = vmatprep.subr.mxu0 0.0
      %1181 = vmatpush1.msra.mxu0 0.0
      %1182 = vmatprep.subr.mxu0 0.0
      %1183 = vmatpush1.msra.mxu0 0.0
      %1184 = vmatprep.mubr.f32.mxu0 0.0
      %1185 = vmatmul.mubr.f32.gmra.mrb[0].mxu0 %v1073
      %v1186 = vpop.f32.mrb[0].mxu0
      %v1187 = vadd.f32 %v1069, %v1186
      %v1188 = vpop.f32.mrb[0].mxu0
      %1189 = vmatprep.mubr.f32.mxu0 0.0
      %1190 = vmatmul.mubr.f32.gmra.mrb[0].mxu0 %v1076
      %v1191 = vpop.f32.mrb[0].mxu0
      %v1192 = vadd.f32 %v1069, %v1191
      %v1193 = vpop.f32.mrb[0].mxu0
      %1194 = vmatprep.mubr.f32.mxu0 0.0
      %1195 = vmatmul.mubr.f32.gmra.mrb[0].mxu0 %v1079
      %v1196 = vpop.f32.mrb[0].mxu0
      %v1197 = vadd.f32 %v1069, %v1196
      %v1198 = vpop.f32.mrb[0].mxu0
      %1199 = vmatprep.mubr.f32.mxu0 0.0
      %1200 = vmatmul.mubr.f32.gmra.mrb[0].mxu0 %v1082
      %v1201 = vpop.f32.mrb[0].mxu0
      %v1202 = vadd.f32 %v1069, %v1201
      %v1203 = vpop.f32.mrb[0].mxu0
      %1204 = vmatprep.mubr.f32.mxu0 0.0
      %1205 = vmatmul.mubr.f32.gmra.mrb[0].mxu0 %v1085
      %v1206 = vpop.f32.mrb[0].mxu0
      %v1207 = vadd.f32 %v1069, %v1206
      %v1208 = vpop.f32.mrb[0].mxu0
      %1209 = vmatprep.mubr.f32.mxu0 0.0
      %1210 = vmatmul.mubr.f32.gmra.mrb[0].mxu0 %v1088
      %v1211 = vpop.f32.mrb[0].mxu0
      %v1212 = vadd.f32 %v1069, %v1211
      %v1213 = vpop.f32.mrb[0].mxu0
      %1214 = vmatprep.mubr.f32.mxu0 0.0
      %1215 = vmatmul.mubr.f32.gmra.mrb[0].mxu0 %v1091
      %v1216 = vpop.f32.mrb[0].mxu0
      %v1217 = vadd.f32 %v1069, %v1216
      %v1218 = vpop.f32.mrb[0].mxu0
      %1219 = vmatprep.mubr.f32.mxu0 0.0
      %1220 = vmatmul.mubr.f32.gmra.mrb[0].mxu0 %v1094
      %v1221 = vpop.f32.mrb[0].mxu0
      %v1222 = vadd.f32 %v1069, %v1221
      %v1223 = vpop.f32.mrb[0].mxu0
      %1224 = vmatprep.mubr.f32.mxu0 0.0
      %1225 = vmatmul.mubr.f32.gmra.mrb[0].mxu0 %v1097
      %v1226 = vpop.f32.mrb[0].mxu0
      %v1227 = vadd.f32 %v1069, %v1226
      %v1228 = vpop.f32.mrb[0].mxu0
      %1229 = vmatprep.mubr.f32.mxu0 0.0
      %1230 = vmatmul.mubr.f32.gmra.mrb[0].mxu0 %v1100
      %v1231 = vpop.f32.mrb[0].mxu0
      %v1232 = vadd.f32 %v1069, %v1231
      %v1233 = vpop.f32.mrb[0].mxu0
      %1234 = vmatprep.mubr.f32.mxu0 0.0
      %1235 = vmatmul.mubr.f32.gmra.mrb[0].mxu0 %v1103
      %v1236 = vpop.f32.mrb[0].mxu0
      %v1237 = vadd.f32 %v1069, %v1236
      %v1238 = vpop.f32.mrb[0].mxu0
      %1239 = vmatprep.mubr.f32.mxu0 0.0
      %1240 = vmatmul.mubr.f32.gmra.mrb[0].mxu0 %v1106
      %v1241 = vpop.f32.mrb[0].mxu0
      %v1242 = vadd.f32 %v1069, %v1241
      %v1243 = vpop.f32.mrb[0].mxu0
      %1244 = vmatprep.mubr.f32.mxu0 0.0
      %1245 = vmatmul.mubr.f32.gmra.mrb[0].mxu0 %v1109
      %v1246 = vpop.f32.mrb[0].mxu0
      %v1247 = vadd.f32 %v1069, %v1246
      %v1248 = vpop.f32.mrb[0].mxu0
      %1249 = vmatprep.mubr.f32.mxu0 0.0
      %1250 = vmatmul.mubr.f32.gmra.mrb[0].mxu0 %v1112
      %v1251 = vpop.f32.mrb[0].mxu0
      %v1252 = vadd.f32 %v1069, %v1251
      %v1253 = vpop.f32.mrb[0].mxu0
      %1254 = vmatprep.mubr.f32.mxu0 0.0
      %1255 = vmatmul.mubr.f32.gmra.mrb[0].mxu0 %v1115
      %v1256 = vpop.f32.mrb[0].mxu0
      %v1257 = vadd.f32 %v1069, %v1256
      %v1258 = vpop.f32.mrb[0].mxu0
      %1259 = vmatprep.mubr.f32.mxu0 0.0
      %1260 = vmatmul.mubr.f32.gmra.mrb[0].mxu0 %v1118
      %v1261 = vpop.f32.mrb[0].mxu0
      %v1262 = vadd.f32 %v1069, %v1261
      %v1263 = vpop.f32.mrb[0].mxu0
      %1264 = vdwg.mxu0
      %1265 = vst.msk [vmem:[%s334] sm:$0xff] %vm368, %v1187
      %1266 = vst.msk [vmem:[%s334 + $0x8] sm:$0xff] %vm368, %v1192
      %1267 = vst.msk [vmem:[%s334 + $0x10] sm:$0xff] %vm368, %v1197
      %1268 = vst.msk [vmem:[%s334 + $0x18] sm:$0xff] %vm368, %v1202
      %1269 = vst.msk [vmem:[%s334 + $0x20] sm:$0xff] %vm368, %v1207
      %1270 = vst.msk [vmem:[%s334 + $0x28] sm:$0xff] %vm368, %v1212
      %1271 = vst.msk [vmem:[%s334 + $0x30] sm:$0xff] %vm368, %v1217
      %1272 = vst.msk [vmem:[%s334 + $0x38] sm:$0xff] %vm368, %v1222
      %1273 = vst.msk [vmem:[%s334 + $0x40] sm:$0xff] %vm368, %v1227
      %1274 = vst.msk [vmem:[%s334 + $0x48] sm:$0xff] %vm368, %v1232
      %1275 = vst.msk [vmem:[%s334 + $0x50] sm:$0xff] %vm368, %v1237
      %1276 = vst.msk [vmem:[%s334 + $0x58] sm:$0xff] %vm368, %v1242
      %1277 = vst.msk [vmem:[%s334 + $0x60] sm:$0xff] %vm368, %v1247
      %1278 = vst.msk [vmem:[%s334 + $0x68] sm:$0xff] %vm368, %v1252
      %1279 = vst.msk [vmem:[%s334 + $0x70] sm:$0xff] %vm368, %v1257
      %1280 = vst.msk [vmem:[%s334 + $0x78] sm:$0xff] %vm368, %v1262
      %s1281 = smul.u32 16, %s20
      %p1282 = scmp.lt.s32.totalorder %s1281, 31
      %s1283 = scalar_select %p1282, %s1281, 31
      %s1284 = smul.addr %s1283, 8
      %s1285 = scalar_lea.vmem %s9, %s1284
      // Predicated region
      $region57: #{tpu_custom_call.1} parent=55 // pred_check
        %p1286 = pneg %p232
      $region58: #{tpu_custom_call.1} parent=55 // pred_check_branch
        %1288 = sbr.rel (%p1286) target = $region60
      $region59: #{tpu_custom_call.1} parent=55 // pred_region
        %s1289 = smul.u32 16, %s20
      $region60: #{tpu_custom_call.1} parent=55 // pred_fallthru
        _
    $region56: #{tpu_custom_call.1} parent=5 // pred_fallthru
      _
    %p1290 = scmp.le.s32.totalorder 2, %s15
    // Predicated region
    $region61: #{tpu_custom_call.1} parent=5 // pred_check
      %p1291 = pneg %p1290
    $region62: #{tpu_custom_call.1} parent=5 // pred_check_branch
      %1293 = sbr.rel (%p1291) target = $region64
    $region63: #{tpu_custom_call.1} parent=5 // pred_region
      %s1294 = ssub.s32 %s15, 2
      // Predicated region
      $region65: #{tpu_custom_call.1} parent=63 // pred_check
        %p1295 = pneg %p238
      $region66: #{tpu_custom_call.1} parent=63 // pred_check_branch
        %1297 = sbr.rel (%p1295) target = $region68
      $region67: #{tpu_custom_call.1} parent=63 // pred_region
        %s1298 = smul.u32 16, %s21
        %p1299 = scmp.lt.s32.totalorder %s1298, 31
        %s1300 = scalar_select %p1299, %s1298, 31
        %s1301 = smul.addr %s1300, 8
        %s1302 = scalar_lea.vmem %s9, %s1301
      $region68: #{tpu_custom_call.1} parent=63 // pred_fallthru
        _
    $region64: #{tpu_custom_call.1} parent=5 // pred_fallthru
      _
  $region6: #{tpu_custom_call.1} parent=0 // loop_footer
    %s19 = sadd.s32 1, %s15
  $region7: #{tpu_custom_call.1} parent=0 // loop_footer_branch
    %14 = sbr.rel target = $region3
  $region8: #{tpu_custom_call.1} parent=0 // loop_exit
    _

</llo_original>
